<compile_context>
chip_gen: v5e
topology: v5e:2x2
jax: 0.10.0
libtpu: 0.0.40
codegen_flags: <defaults>
</compile_context>

<pallas_src>
import functools

import jax
import jax.numpy as jnp
from jax.experimental import pallas as pl
from jax.experimental.pallas import tpu as pltpu

DEFAULT_BLOCK_BATCH = 1024   # per-grid-step overhead ~0.35us; large tiles amortize it, VMEM use stays tiny


def _round_up(n, m):
    return ((n + m - 1) // m) * m


def qnetwork_kernel(x_ref, w1_ref, b1_ref, w2_ref, b2_ref, w3_ref, b3_ref, out_ref):
    """Fused 3-layer MLP on one batch tile.

    x arrives f32 and is cast to bf16 in-kernel; all matmuls use bf16 MXU inputs with f32
    accumulation (preferred_element_type); bias-add and ReLU stay in f32.
    """
    x = x_ref[...].astype(jnp.bfloat16)
    # fc1 + ReLU
    h1 = jnp.dot(x, w1_ref[...], preferred_element_type=jnp.float32)
    h1 = jnp.maximum(h1 + b1_ref[...], 0.0)
    # fc2 + ReLU
    h2 = jnp.dot(h1.astype(jnp.bfloat16), w2_ref[...], preferred_element_type=jnp.float32)
    h2 = jnp.maximum(h2 + b2_ref[...], 0.0)
    # fc3 (native action_size width; masked partial store is far cheaper than a 128-lane f32 slab)
    out = jnp.dot(h2.astype(jnp.bfloat16), w3_ref[...], preferred_element_type=jnp.float32)
    out_ref[...] = (out + b3_ref[...]).astype(out_ref.dtype)


def _pick_batch_tile(batch, block_batch):
    """Batch tile: multiple of 16, capped at block_batch. Once batch >= 32, force >=2 grid
    steps so the 'parallel' axis can shard across both TensorCores on v7x."""
    tb = max(16, min(_round_up(block_batch, 16), _round_up(batch, 16)))
    if batch >= 32 and pl.cdiv(batch, tb) < 2:
        tb = max(16, _round_up(pl.cdiv(batch, 2), 16))
    return tb


def prepare_params(params):
    """One-time preprocessing: weights -> bf16 (in, out), biases -> (1, out) f32.
    Call once and reuse; keeps the per-call forward free of wrapper-side cast/pad passes."""
    w1, b1, w2, b2, w3, b3 = params
    as_bias = lambda b: jnp.asarray(b, jnp.float32).reshape(1, -1)
    return (w1.astype(jnp.bfloat16), as_bias(b1),
            w2.astype(jnp.bfloat16), as_bias(b2),
            w3.astype(jnp.bfloat16), as_bias(b3))


@functools.partial(jax.jit, static_argnames=("block_batch",))
def qnetwork_forward(x, prepared_params, *, block_batch=DEFAULT_BLOCK_BATCH):
    """x: (batch, state_size) f32. prepared_params: output of prepare_params()."""
    w1, b1, w2, b2, w3, b3 = prepared_params
    batch, state_size = x.shape
    fc1_units = w1.shape[1]
    fc2_units = w2.shape[1]
    action_size = w3.shape[1]

    tb = _pick_batch_tile(batch, block_batch)
    # Ragged last block: OOB input rows are garbage, OOB output rows are dropped by Pallas.
    # Safe because every row is independent (no cross-row reductions).
    grid = (pl.cdiv(batch, tb),)

    # weights/biases: constant block index -> DMA'd once, VMEM-resident across grid steps
    resident = lambda shape: pl.BlockSpec(shape, lambda i: (0, 0))

    out = pl.pallas_call(
        qnetwork_kernel,
        out_shape=jax.ShapeDtypeStruct((batch, action_size), jnp.float32),
        grid=grid,
        in_specs=[
            pl.BlockSpec((tb, state_size), lambda i: (i, 0)),   # x tile streams over batch (f32)
            resident((state_size, fc1_units)),
            resident((1, fc1_units)),
            resident((fc1_units, fc2_units)),
            resident((1, fc2_units)),
            resident((fc2_units, action_size)),
            resident((1, action_size)),
        ],
        out_specs=pl.BlockSpec((tb, action_size), lambda i: (i, 0)),
        compiler_params=pltpu.CompilerParams(
            # batch tiles are independent -> shard across both TensorCores on v7x
            dimension_semantics=("parallel",),
        ),
    )(x, w1, b1, w2, b2, w3, b3)
    return out


def init_params(key, state_size, action_size, fc1_units=128, fc2_units=128):
    """Deterministic init mimicking PyTorch's default Linear init (U[-1/sqrt(fan_in), +1/sqrt(fan_in)])."""
    keys = jax.random.split(key, 6)

    def linear(kw, kb, fan_in, fan_out):
        bound = 1.0 / jnp.sqrt(fan_in)
        w = jax.random.uniform(kw, (fan_in, fan_out), jnp.float32, -bound, bound)
        b = jax.random.uniform(kb, (1, fan_out), jnp.float32, -bound, bound)
        return w, b

    w1, b1 = linear(keys[0], keys[1], state_size, fc1_units)
    w2, b2 = linear(keys[2], keys[3], fc1_units, fc2_units)
    w3, b3 = linear(keys[4], keys[5], fc2_units, action_size)
    return (w1, b1, w2, b2, w3, b3)


def reference_forward_f32(x, params):
    """Pure f32 reference (PyTorch semantics)."""
    w1, b1, w2, b2, w3, b3 = params
    h1 = jnp.maximum(x @ w1 + b1, 0.0)
    h2 = jnp.maximum(h1 @ w2 + b2, 0.0)
    return h2 @ w3 + b3


def reference_forward_bf16(x, params):
    """Mirrors the kernel's numerics: bf16 matmul inputs, f32 accumulation / bias / ReLU.
    Note: bf16 is a deliberate accuracy trade-off vs the f32 PyTorch reference."""
    w1, b1, w2, b2, w3, b3 = params
    dot = lambda a, b: jnp.dot(a.astype(jnp.bfloat16), b.astype(jnp.bfloat16),
                               preferred_element_type=jnp.float32)
    h1 = jnp.maximum(dot(x, w1) + b1, 0.0)
    h2 = jnp.maximum(dot(h1, w2) + b2, 0.0)
    return dot(h2, w3) + b3


if __name__ == "__main__":
    batch = 8
    state_size = 8
    action_size = 4

    key = jax.random.PRNGKey(0)
    k_params, k_x, k_x2 = jax.random.split(key, 3)
    params = init_params(k_params, state_size, action_size)
    prepared = prepare_params(params)   # one-time weight cast / bias reshape

    # small deployment-sized batch (single tile, single grid step)
    x = jax.random.normal(k_x, (batch, state_size), dtype=jnp.float32)
    out = jax.block_until_ready(qnetwork_forward(x, prepared))
    assert out.shape == (batch, action_size)
    assert jnp.allclose(out, reference_forward_bf16(x, params), atol=1e-4, rtol=1e-4), \
        "mismatch vs bf16-matched reference"
    assert jnp.allclose(out, reference_forward_f32(x, params), atol=5e-2, rtol=5e-2), \
        "mismatch vs f32 reference"

    # exercise the batch grid: >=2 tiles (v7x dual-TC path) + ragged tail block
    x2 = jax.random.normal(k_x2, (300, state_size), dtype=jnp.float32)
    out2 = jax.block_until_ready(qnetwork_forward(x2, prepared))
    assert out2.shape == (300, action_size)
    assert jnp.allclose(out2, reference_forward_bf16(x2, params), atol=1e-4, rtol=1e-4), \
        "mismatch vs bf16-matched reference (gridded batch)"

    print("KERNEL_OK")
</pallas_src>

<mosaic_0001>
module attributes {stable_mosaic.version = 11 : i64} {
  func.func @qnetwork_kernel(%arg0: i32, %arg1: memref<16x8xf32, #tpu.memory_space<vmem>>, %arg2: memref<8x128xbf16, #tpu.memory_space<vmem>>, %arg3: memref<1x128xf32, #tpu.memory_space<vmem>>, %arg4: memref<128x128xbf16, #tpu.memory_space<vmem>>, %arg5: memref<1x128xf32, #tpu.memory_space<vmem>>, %arg6: memref<128x4xbf16, #tpu.memory_space<vmem>>, %arg7: memref<1x4xf32, #tpu.memory_space<vmem>>, %arg8: memref<16x4xf32, #tpu.memory_space<vmem>>) attributes {dimension_semantics = [#tpu.dimension_semantics<parallel>], iteration_bounds = array<i64: 1>, scalar_prefetch = 0 : i64, scratch_operands = 0 : i64, tpu.core_type = #tpu.core_type<tc>, window_params = [{transform_indices = @transform_0, window_bounds = array<i64: 16, 8>}, {pipeline_mode = #tpu.pipeline_mode<synchronous>, transform_indices = @transform_1, window_bounds = array<i64: 8, 128>}, {pipeline_mode = #tpu.pipeline_mode<synchronous>, transform_indices = @transform_2, window_bounds = array<i64: 1, 128>}, {pipeline_mode = #tpu.pipeline_mode<synchronous>, transform_indices = @transform_3, window_bounds = array<i64: 128, 128>}, {pipeline_mode = #tpu.pipeline_mode<synchronous>, transform_indices = @transform_4, window_bounds = array<i64: 1, 128>}, {pipeline_mode = #tpu.pipeline_mode<synchronous>, transform_indices = @transform_5, window_bounds = array<i64: 128, 4>}, {pipeline_mode = #tpu.pipeline_mode<synchronous>, transform_indices = @transform_6, window_bounds = array<i64: 1, 4>}, {transform_indices = @transform_7, window_bounds = array<i64: 16, 4>}]} {
    %c0 = arith.constant 0 : index
    %c0_0 = arith.constant 0 : index
    %0 = vector.load %arg1[%c0, %c0_0] : memref<16x8xf32, #tpu.memory_space<vmem>>, vector<16x8xf32>
    %1 = arith.truncf %0 : vector<16x8xf32> to vector<16x8xbf16>
    %c0_1 = arith.constant 0 : index
    %c0_2 = arith.constant 0 : index
    %2 = vector.load %arg2[%c0_1, %c0_2] : memref<8x128xbf16, #tpu.memory_space<vmem>>, vector<8x128xbf16>
    %cst = arith.constant dense<0.000000e+00> : vector<16x128xf32>
    %3 = tpu.matmul %1, %2, %cst {dimension_numbers = #tpu.dot_dimension_numbers<[1], [0], [0], [1], [0, 0, 1, 1], [], []>} : vector<16x8xbf16>, vector<8x128xbf16>, vector<16x128xf32> -> vector<16x128xf32>
    %c0_3 = arith.constant 0 : index
    %c0_4 = arith.constant 0 : index
    %4 = vector.load %arg3[%c0_3, %c0_4] : memref<1x128xf32, #tpu.memory_space<vmem>>, vector<1x128xf32>
    %5 = vector.broadcast %4 : vector<1x128xf32> to vector<16x128xf32>
    %6 = arith.addf %3, %5 : vector<16x128xf32>
    %cst_5 = arith.constant 0.000000e+00 : f32
    %7 = vector.broadcast %cst_5 : f32 to vector<16x128xf32>
    %8 = arith.maximumf %6, %7 : vector<16x128xf32>
    %9 = arith.truncf %8 : vector<16x128xf32> to vector<16x128xbf16>
    %c0_6 = arith.constant 0 : index
    %c0_7 = arith.constant 0 : index
    %10 = vector.load %arg4[%c0_6, %c0_7] : memref<128x128xbf16, #tpu.memory_space<vmem>>, vector<128x128xbf16>
    %cst_8 = arith.constant dense<0.000000e+00> : vector<16x128xf32>
    %11 = tpu.matmul %9, %10, %cst_8 {dimension_numbers = #tpu.dot_dimension_numbers<[1], [0], [0], [1], [0, 0, 1, 1], [], []>} : vector<16x128xbf16>, vector<128x128xbf16>, vector<16x128xf32> -> vector<16x128xf32>
    %c0_9 = arith.constant 0 : index
    %c0_10 = arith.constant 0 : index
    %12 = vector.load %arg5[%c0_9, %c0_10] : memref<1x128xf32, #tpu.memory_space<vmem>>, vector<1x128xf32>
    %13 = vector.broadcast %12 : vector<1x128xf32> to vector<16x128xf32>
    %14 = arith.addf %11, %13 : vector<16x128xf32>
    %cst_11 = arith.constant 0.000000e+00 : f32
    %15 = vector.broadcast %cst_11 : f32 to vector<16x128xf32>
    %16 = arith.maximumf %14, %15 : vector<16x128xf32>
    %17 = arith.truncf %16 : vector<16x128xf32> to vector<16x128xbf16>
    %c0_12 = arith.constant 0 : index
    %c0_13 = arith.constant 0 : index
    %18 = vector.load %arg6[%c0_12, %c0_13] : memref<128x4xbf16, #tpu.memory_space<vmem>>, vector<128x4xbf16>
    %cst_14 = arith.constant dense<0.000000e+00> : vector<16x4xf32>
    %19 = tpu.matmul %17, %18, %cst_14 {dimension_numbers = #tpu.dot_dimension_numbers<[1], [0], [0], [1], [0, 0, 1, 1], [], []>} : vector<16x128xbf16>, vector<128x4xbf16>, vector<16x4xf32> -> vector<16x4xf32>
    %c0_15 = arith.constant 0 : index
    %c0_16 = arith.constant 0 : index
    %20 = vector.load %arg7[%c0_15, %c0_16] : memref<1x4xf32, #tpu.memory_space<vmem>>, vector<1x4xf32>
    %21 = vector.broadcast %20 : vector<1x4xf32> to vector<16x4xf32>
    %22 = arith.addf %19, %21 : vector<16x4xf32>
    %c0_17 = arith.constant 0 : index
    %c0_18 = arith.constant 0 : index
    %23 = vector.load %arg8[%c0_17, %c0_18] : memref<16x4xf32, #tpu.memory_space<vmem>>, vector<16x4xf32>
    tpu.vector_store %arg8[%c0_17, %c0_18], %22 {strides = array<i32>} : memref<16x4xf32, #tpu.memory_space<vmem>>, vector<16x4xf32>,
    return
  }
  func.func @transform_0(%arg0: i32) -> (i32, i32) {
    %c0_i32 = arith.constant 0 : i32
    %c0_i32_0 = arith.constant 0 : i32
    return %arg0, %c0_i32 : i32, i32
  }
  func.func @transform_1(%arg0: i32) -> (i32, i32) {
    %c0_i32 = arith.constant 0 : i32
    %c0_i32_0 = arith.constant 0 : i32
    %c0_i32_1 = arith.constant 0 : i32
    return %c0_i32, %c0_i32_0 : i32, i32
  }
  func.func @transform_2(%arg0: i32) -> (i32, i32) {
    %c0_i32 = arith.constant 0 : i32
    %c0_i32_0 = arith.constant 0 : i32
    %c0_i32_1 = arith.constant 0 : i32
    return %c0_i32, %c0_i32_0 : i32, i32
  }
  func.func @transform_3(%arg0: i32) -> (i32, i32) {
    %c0_i32 = arith.constant 0 : i32
    %c0_i32_0 = arith.constant 0 : i32
    %c0_i32_1 = arith.constant 0 : i32
    return %c0_i32, %c0_i32_0 : i32, i32
  }
  func.func @transform_4(%arg0: i32) -> (i32, i32) {
    %c0_i32 = arith.constant 0 : i32
    %c0_i32_0 = arith.constant 0 : i32
    %c0_i32_1 = arith.constant 0 : i32
    return %c0_i32, %c0_i32_0 : i32, i32
  }
  func.func @transform_5(%arg0: i32) -> (i32, i32) {
    %c0_i32 = arith.constant 0 : i32
    %c0_i32_0 = arith.constant 0 : i32
    %c0_i32_1 = arith.constant 0 : i32
    return %c0_i32, %c0_i32_0 : i32, i32
  }
  func.func @transform_6(%arg0: i32) -> (i32, i32) {
    %c0_i32 = arith.constant 0 : i32
    %c0_i32_0 = arith.constant 0 : i32
    %c0_i32_1 = arith.constant 0 : i32
    return %c0_i32, %c0_i32_0 : i32, i32
  }
  func.func @transform_7(%arg0: i32) -> (i32, i32) {
    %c0_i32 = arith.constant 0 : i32
    %c0_i32_0 = arith.constant 0 : i32
    return %arg0, %c0_i32 : i32, i32
  }
}

</mosaic_0001>

<llo_original>
// kernel: qnetwork_forward.1
$region0: #{qnetwork_forward.1}
  #allocation0 [shape = 'u32[]', space=smem, size = 0x4, offset = 0x4, fixed_abs, tag = 'smem constant byte address 0x4 - core index']
  #allocation1 [shape = 'u32[72,128]{1,0:T(1,128)}', space=vmem, size = 0x9000, scoped, tag = 'internal scratch']
  %s0 = inlined_call_operand.hbm [shape: f32[8,8], index: 0, kind: input, shape index: {}]
  %s1 = inlined_call_operand.hbm [shape: bf16[8,128], index: 1, kind: input, shape index: {}]
  %s2 = inlined_call_operand.vmem [shape: f32[1,128], index: 2, kind: input, shape index: {}]
  %s3 = inlined_call_operand.vmem [shape: bf16[128,128], index: 3, kind: input, shape index: {}]
  %s4 = inlined_call_operand.vmem [shape: f32[1,128], index: 4, kind: input, shape index: {}]
  %s5 = inlined_call_operand.vmem [shape: bf16[128,4], index: 5, kind: input, shape index: {}]
  %s6 = inlined_call_operand.vmem [shape: f32[1,4], index: 6, kind: input, shape index: {}]
  %s7 = inlined_call_operand.vmem [shape: f32[8,4], index: 7, kind: output, shape index: {}]
  %s8 = sld [smem:[#allocation0]]
  $region80: #{qnetwork_forward.1} parent=0
    _
  %s10 = ssub.s32 1, %s8
  %s11 = scalar_select 0, %s10, %s8
  $region1: #{qnetwork_forward.1} parent=0
    #allocation2 [shape = 'u8[8192]{0}', space=vmem, size = 0x2000, scoped, tag = 'input window, operand 0, single buffered']
    #allocation3 [shape = 's32[1]{0}', space=sflag, size = 0x4, scoped, tag = 'scoped memory for qnetwork_forward.1']
    #allocation4 [shape = 'u8[2048]{0}', space=vmem, size = 0x800, scoped, tag = 'input window, operand 1, single buffered']
    #allocation5 [shape = 's32[1]{0}', space=sflag, size = 0x4, scoped, tag = 'scoped memory for qnetwork_forward.1']
    #allocation6 [shape = 'u8[8192]{0}', space=vmem, size = 0x2000, scoped, tag = 'output window, operand 0, single buffered']
    %12 = vsyncpa [#allocation3], 0
    %13 = vsyncpa [#allocation5], 0
    // Predicated region
    $region2: #{qnetwork_forward.1} parent=1 // pred_check
      _
    $region3: #{qnetwork_forward.1} parent=1 // pred_check_branch
      %15 = sbr.rel (0) target = $region5
    $region4: #{qnetwork_forward.1} parent=1 // pred_region
      %17 = vsyncadd [#allocation3], 128
      %s18 = sshll.u32 %s0, 4
      %s19 = int_to_ptr.hbm [resolvable:$true] %s18
      %s20 = sshll.u32 [#allocation2], 4
      %s21 = int_to_ptr.vmem [resolvable:$true] %s20
      %26 = dma.hbm_to_vmem [thread:$0]  %s19, 128, %s21, [#allocation3], 128, 128, 8
    $region5: #{qnetwork_forward.1} parent=1 // pred_fallthru
      _
    // Predicated region
    $region6: #{qnetwork_forward.1} parent=1 // pred_check
      _
    $region7: #{qnetwork_forward.1} parent=1 // pred_check_branch
      %28 = sbr.rel (0) target = $region9
    $region8: #{qnetwork_forward.1} parent=1 // pred_region
      %30 = vsyncadd [#allocation5], 0
      %s32 = sshll.u32 %s1, 4
      %s33 = int_to_ptr.hbm [resolvable:$true] %s32
      %s34 = sshll.u32 [#allocation4], 4
      %s35 = int_to_ptr.vmem [resolvable:$true] %s34
      %37 = dma.hbm_to_vmem [thread:$0]  %s33, 64, %s35, [#allocation5]
    $region9: #{qnetwork_forward.1} parent=1 // pred_fallthru
      _
    // Predicated region
    $region10: #{qnetwork_forward.1} parent=1 // pred_check
      _
    $region11: #{qnetwork_forward.1} parent=1 // pred_check_branch
      %39 = sbr.rel (0) target = $region13
    $region12: #{qnetwork_forward.1} parent=1 // pred_region
      _
    $region13: #{qnetwork_forward.1} parent=1 // pred_fallthru
      _
    // Predicated region
    $region14: #{qnetwork_forward.1} parent=1 // pred_check
      _
    $region15: #{qnetwork_forward.1} parent=1 // pred_check_branch
      %41 = sbr.rel (0) target = $region17
    $region16: #{qnetwork_forward.1} parent=1 // pred_region
      _
    $region17: #{qnetwork_forward.1} parent=1 // pred_fallthru
      _
    // Predicated region
    $region18: #{qnetwork_forward.1} parent=1 // pred_check
      _
    $region19: #{qnetwork_forward.1} parent=1 // pred_check_branch
      %43 = sbr.rel (0) target = $region21
    $region20: #{qnetwork_forward.1} parent=1 // pred_region
      _
    $region21: #{qnetwork_forward.1} parent=1 // pred_fallthru
      _
    // Predicated region
    $region22: #{qnetwork_forward.1} parent=1 // pred_check
      _
    $region23: #{qnetwork_forward.1} parent=1 // pred_check_branch
      %45 = sbr.rel (0) target = $region25
    $region24: #{qnetwork_forward.1} parent=1 // pred_region
      _
    $region25: #{qnetwork_forward.1} parent=1 // pred_fallthru
      _
    // Predicated region
    $region26: #{qnetwork_forward.1} parent=1 // pred_check
      _
    $region27: #{qnetwork_forward.1} parent=1 // pred_check_branch
      %47 = sbr.rel (0) target = $region29
    $region28: #{qnetwork_forward.1} parent=1 // pred_region
      _
    $region29: #{qnetwork_forward.1} parent=1 // pred_fallthru
      _
    // Predicated region
    $region30: #{qnetwork_forward.1} parent=1 // pred_check
      _
    $region31: #{qnetwork_forward.1} parent=1 // pred_check_branch
      %49 = sbr.rel (0) target = $region33
    $region32: #{qnetwork_forward.1} parent=1 // pred_region
      %51 = dma.done [#allocation3], 256
    $region33: #{qnetwork_forward.1} parent=1 // pred_fallthru
      _
    // Predicated region
    $region34: #{qnetwork_forward.1} parent=1 // pred_check
      _
    $region35: #{qnetwork_forward.1} parent=1 // pred_check_branch
      %53 = sbr.rel (0) target = $region37
    $region36: #{qnetwork_forward.1} parent=1 // pred_region
      %55 = dma.done [#allocation5], 64
    $region37: #{qnetwork_forward.1} parent=1 // pred_fallthru
      _
    %v57 = vld [vmem:[#allocation2] sm:$0xff]
    %v58 = vld [vmem:[#allocation2 + $0x8] sm:$0xff]
    %v59 = vpack.c.bf16 %v58, %v57
    %v60 = vld [vmem:[#allocation4] sm:$0xf]
    %v61 = vld [vmem:[%s2] sm:$0x1]
    %v63 = vperm.slane %v61, 0
    %vm65 = vcmask 64512
    %v67 = vsel %vm65, %v59, 0
    %vm69 = vcmask 1043456
    %v71 = vsel %vm69, %v60, 0
    %73 = vmatpush.bf16.msra.mxu0 0
    %74 = vmatpush.bf16.msra.mxu0 0
    %75 = vmatpush.bf16.msra.mxu0 0
    %76 = vmatpush.bf16.msra.mxu0 0
    %77 = vmatpush.bf16.msra.mxu0 0
    %78 = vmatpush.bf16.msra.mxu0 0
    %79 = vmatpush.bf16.msra.mxu0 0
    %80 = vmatpush.bf16.msra.mxu0 %v71
    %81 = vmatmul.bf16.gmra.mxu0 %v67
    %v82 = vpop.f32.mrf.mxu0
    %v83 = vadd.f32 %v63, %v82
    %v84 = vpop.f32.mrf.mxu0
    %v85 = vadd.f32 %v63, %v84
    %86 = vdwg.mxu0
    %v87 = vmax.f32 %v83, 0.0
    %v88 = vmax.f32 %v85, 0.0
    %v89 = vpack.c.bf16 %v88, %v87
    %v90 = vld [vmem:[%s3] sm:$0xf]
    %v91 = vld [vmem:[%s3 + $0x4] sm:$0xf]
    %v92 = vld [vmem:[%s3 + $0x8] sm:$0xf]
    %v93 = vld [vmem:[%s3 + $0xc] sm:$0xf]
    %v94 = vld [vmem:[%s3 + $0x10] sm:$0xf]
    %v95 = vld [vmem:[%s3 + $0x14] sm:$0xf]
    %v96 = vld [vmem:[%s3 + $0x18] sm:$0xf]
    %v97 = vld [vmem:[%s3 + $0x1c] sm:$0xf]
    %v98 = vld [vmem:[%s3 + $0x20] sm:$0xf]
    %v99 = vld [vmem:[%s3 + $0x24] sm:$0xf]
    %v100 = vld [vmem:[%s3 + $0x28] sm:$0xf]
    %v101 = vld [vmem:[%s3 + $0x2c] sm:$0xf]
    %v102 = vld [vmem:[%s3 + $0x30] sm:$0xf]
    %v103 = vld [vmem:[%s3 + $0x34] sm:$0xf]
    %v104 = vld [vmem:[%s3 + $0x38] sm:$0xf]
    %v105 = vld [vmem:[%s3 + $0x3c] sm:$0xf]
    %v106 = vld [vmem:[%s4] sm:$0x1]
    %v108 = vperm.slane %v106, 0
    %v126 = vunpack.c.l.b16 %v90
    %v127 = vunpack.c.l.b16 %v91
    %v128 = vunpack.c.l.b16 %v92
    %v129 = vunpack.c.l.b16 %v93
    %v130 = vunpack.c.l.b16 %v94
    %v131 = vunpack.c.l.b16 %v95
    %v132 = vunpack.c.l.b16 %v96
    %v133 = vunpack.c.l.b16 %v97
    %v134 = vunpack.c.l.b16 %v98
    %v135 = vunpack.c.l.b16 %v99
    %v136 = vunpack.c.l.b16 %v100
    %v137 = vunpack.c.l.b16 %v101
    %v138 = vunpack.c.l.b16 %v102
    %v139 = vunpack.c.l.b16 %v103
    %v140 = vunpack.c.l.b16 %v104
    %v141 = vunpack.c.l.b16 %v105
    %v142 = vpack.c.b16 %v127, %v126
    %v143 = vpack.c.b16 %v129, %v128
    %v144 = vpack.c.b16 %v131, %v130
    %v145 = vpack.c.b16 %v133, %v132
    %v146 = vpack.c.b16 %v135, %v134
    %v147 = vpack.c.b16 %v137, %v136
    %v148 = vpack.c.b16 %v139, %v138
    %v149 = vpack.c.b16 %v141, %v140
    %158 = vmatpush.bf16.msra.mxu0 %v149
    %159 = vmatpush.bf16.msra.mxu0 %v148
    %160 = vmatpush.bf16.msra.mxu0 %v147
    %161 = vmatpush.bf16.msra.mxu0 %v146
    %162 = vmatpush.bf16.msra.mxu0 %v145
    %163 = vmatpush.bf16.msra.mxu0 %v144
    %164 = vmatpush.bf16.msra.mxu0 %v143
    %165 = vmatpush.bf16.msra.mxu0 %v142
    %166 = vmatmul.bf16.gmra.mxu0 %v89
    %v167 = vpop.f32.mrf.mxu0
    %v168 = vadd.f32 %v108, %v167
    %v169 = vpop.f32.mrf.mxu0
    %v170 = vadd.f32 %v108, %v169
    %171 = vdwg.mxu0
    %v172 = vmax.f32 %v168, 0.0
    %v173 = vmax.f32 %v170, 0.0
    %v174 = vpack.c.bf16 %v173, %v172
    %v175 = vld [vmem:[%s5] sm:$0xf]
    %v176 = vld [vmem:[%s5 + $0x4] sm:$0xf]
    %v177 = vld [vmem:[%s5 + $0x8] sm:$0xf]
    %v178 = vld [vmem:[%s5 + $0xc] sm:$0xf]
    %v179 = vld [vmem:[%s5 + $0x10] sm:$0xf]
    %v180 = vld [vmem:[%s5 + $0x14] sm:$0xf]
    %v181 = vld [vmem:[%s5 + $0x18] sm:$0xf]
    %v182 = vld [vmem:[%s5 + $0x1c] sm:$0xf]
    %v183 = vld [vmem:[%s5 + $0x20] sm:$0xf]
    %v184 = vld [vmem:[%s5 + $0x24] sm:$0xf]
    %v185 = vld [vmem:[%s5 + $0x28] sm:$0xf]
    %v186 = vld [vmem:[%s5 + $0x2c] sm:$0xf]
    %v187 = vld [vmem:[%s5 + $0x30] sm:$0xf]
    %v188 = vld [vmem:[%s5 + $0x34] sm:$0xf]
    %v189 = vld [vmem:[%s5 + $0x38] sm:$0xf]
    %v190 = vld [vmem:[%s5 + $0x3c] sm:$0xf]
    %v191 = vld [vmem:[%s6] sm:$0x1]
    %v193 = vperm.slane %v191, 0
    %v211 = vunpack.c.l.b16 %v175
    %v212 = vunpack.c.l.b16 %v176
    %v213 = vunpack.c.l.b16 %v177
    %v214 = vunpack.c.l.b16 %v178
    %v215 = vunpack.c.l.b16 %v179
    %v216 = vunpack.c.l.b16 %v180
    %v217 = vunpack.c.l.b16 %v181
    %v218 = vunpack.c.l.b16 %v182
    %v219 = vunpack.c.l.b16 %v183
    %v220 = vunpack.c.l.b16 %v184
    %v221 = vunpack.c.l.b16 %v185
    %v222 = vunpack.c.l.b16 %v186
    %v223 = vunpack.c.l.b16 %v187
    %v224 = vunpack.c.l.b16 %v188
    %v225 = vunpack.c.l.b16 %v189
    %v226 = vunpack.c.l.b16 %v190
    %v227 = vpack.c.b16 %v212, %v211
    %v228 = vpack.c.b16 %v214, %v213
    %v229 = vpack.c.b16 %v216, %v215
    %v230 = vpack.c.b16 %v218, %v217
    %v231 = vpack.c.b16 %v220, %v219
    %v232 = vpack.c.b16 %v222, %v221
    %v233 = vpack.c.b16 %v224, %v223
    %v234 = vpack.c.b16 %v226, %v225
    %243 = vmatpush.bf16.msra.mxu0 %v234
    %244 = vmatpush.bf16.msra.mxu0 %v233
    %245 = vmatpush.bf16.msra.mxu0 %v232
    %246 = vmatpush.bf16.msra.mxu0 %v231
    %247 = vmatpush.bf16.msra.mxu0 %v230
    %248 = vmatpush.bf16.msra.mxu0 %v229
    %249 = vmatpush.bf16.msra.mxu0 %v228
    %250 = vmatpush.bf16.msra.mxu0 %v227
    %251 = vmatmul.bf16.gmra.mxu0 %v174
    %v252 = vpop.f32.mrf.mxu0
    %v253 = vadd.f32 %v193, %v252
    %v254 = vpop.f32.mrf.mxu0
    %v255 = vadd.f32 %v193, %v254
    %256 = vdwg.mxu0
    %vm257 = vcmask 31744
    %258 = vst.msk [vmem:[#allocation6] sm:$0xff] %vm257, %v253
    %259 = vst.msk [vmem:[#allocation6 + $0x8] sm:$0xff] %vm257, %v255
    // Predicated region
    $region38: #{qnetwork_forward.1} parent=1 // pred_check
      _
    $region39: #{qnetwork_forward.1} parent=1 // pred_check_branch
      %261 = sbr.rel (0) target = $region41
    $region40: #{qnetwork_forward.1} parent=1 // pred_region
      // Predicated region
      $region42: #{qnetwork_forward.1} parent=40 // pred_check
        _
      $region43: #{qnetwork_forward.1} parent=40 // pred_check_branch
        %263 = sbr.rel (0) target = $region45
      $region44: #{qnetwork_forward.1} parent=40 // pred_region
        // Predicated region
        $region46: #{qnetwork_forward.1} parent=44 // pred_check
          _
        $region47: #{qnetwork_forward.1} parent=44 // pred_check_branch
          %265 = sbr.rel (0) target = $region49
        $region48: #{qnetwork_forward.1} parent=44 // pred_region
          // Predicated region
          $region61: #{qnetwork_forward.1} parent=48 // pred_check
            _
          $region62: #{qnetwork_forward.1} parent=48 // pred_check_branch
            %281 = sbr.rel (0) target = $region64
          $region63: #{qnetwork_forward.1} parent=48 // pred_region
            loop: start=0, step=1, limit=1
            $region65: #{qnetwork_forward.1} parent=63 // loop_pre_header
              _
            $region66: #{qnetwork_forward.1} parent=63 // loop_header
              %s283 = sphi 0, %s287
              %p284 = scmp.ge.s32.totalorder %s283, 1
              %s288 = sphi [#allocation6], [#allocation6]
              %s289 = sphi %s7, %s7
            $region67: #{qnetwork_forward.1} parent=63 // loop_header_branch
              %286 = sbr.rel (%p284) target = $region71
            $region68: #{qnetwork_forward.1} parent=63 // loop_body
              %v290 = vld [vmem:[%s288] sm:$0xff]
              %291 = vst [vmem:[%s289] sm:$0xff] %v290
            $region69: #{qnetwork_forward.1} parent=63 // loop_footer
              %s287 = sadd.s32 1, %s283
            $region70: #{qnetwork_forward.1} parent=63 // loop_footer_branch
              %282 = sbr.rel target = $region66
            $region71: #{qnetwork_forward.1} parent=63 // loop_exit
              _
          $region64: #{qnetwork_forward.1} parent=48 // pred_fallthru
            _
          // Predicated region
          $region72: #{qnetwork_forward.1} parent=48 // pred_check
            _
          $region73: #{qnetwork_forward.1} parent=48 // pred_check_branch
            %293 = sbr.rel target = $region75
          $region74: #{qnetwork_forward.1} parent=48 // pred_region
            _
          $region75: #{qnetwork_forward.1} parent=48 // pred_fallthru
            _
        $region49: #{qnetwork_forward.1} parent=44 // pred_fallthru
          _
        // Predicated region
        $region50: #{qnetwork_forward.1} parent=44 // pred_check
          _
        $region51: #{qnetwork_forward.1} parent=44 // pred_check_branch
          %267 = sbr.rel target = $region53
        $region52: #{qnetwork_forward.1} parent=44 // pred_region
          %s269 = ssub.s32 256, 1
          loop: start=0, step=1, limit=1
          $region54: #{qnetwork_forward.1} parent=52 // loop_pre_header
            _
          $region55: #{qnetwork_forward.1} parent=52 // loop_header
            %s271 = sphi 0, %s275
            %p272 = scmp.ge.s32.totalorder %s271, 1
            %s276 = sphi [#allocation6], [#allocation6]
            %s277 = sphi %s7, %s7
          $region56: #{qnetwork_forward.1} parent=52 // loop_header_branch
            %274 = sbr.rel (%p272) target = $region60
          $region57: #{qnetwork_forward.1} parent=52 // loop_body
            %v278 = vld [vmem:[%s276] sm:%s269]
            %279 = vst [vmem:[%s277] sm:%s269] %v278
          $region58: #{qnetwork_forward.1} parent=52 // loop_footer
            %s275 = sadd.s32 1, %s271
          $region59: #{qnetwork_forward.1} parent=52 // loop_footer_branch
            %270 = sbr.rel target = $region55
          $region60: #{qnetwork_forward.1} parent=52 // loop_exit
            _
        $region53: #{qnetwork_forward.1} parent=44 // pred_fallthru
          _
      $region45: #{qnetwork_forward.1} parent=40 // pred_fallthru
        _
      %294 = vnop
    $region41: #{qnetwork_forward.1} parent=1 // pred_fallthru
      _
    // Predicated region
    $region76: #{qnetwork_forward.1} parent=1 // pred_check
      _
    $region77: #{qnetwork_forward.1} parent=1 // pred_check_branch
      %296 = sbr.rel (0) target = $region79
    $region78: #{qnetwork_forward.1} parent=1 // pred_region
      _
    $region79: #{qnetwork_forward.1} parent=1 // pred_fallthru
      _
    %297 = vsyncpa [#allocation3], 1
    %298 = vsyncpa [#allocation5], 1

</llo_original>
